<compile_context>
chip_gen: v6e
topology: v6e:2x2x1
jax: 0.10.0
libtpu: 0.0.40
codegen_flags: <defaults>
</compile_context>

<pallas_src>
import functools

import numpy as np

import jax
import jax.numpy as jnp
from jax.experimental import pallas as pl
from jax.experimental.pallas import tpu as pltpu


def _round_up(x, m):
    return ((x + m - 1) // m) * m


# --------------------------------------------------------------------------- #
# Kernel
# --------------------------------------------------------------------------- #
def _cnn_kernel(emb_ref, wconv_ref, bconv_ref, mask_ref, wfc_ref, bfc_ref,
                out_ref, *, kernel_max, l_out_pad):
    """conv (single fused MXU matmul) + bias + ReLU + mask + max-over-time + FC.

    emb_ref   : (B_blk, S_pad, E)   bf16  embedding tile (streamed per step)
    wconv_ref : (k_max*E, C_pad)    bf16  flattened packed conv weights
    bconv_ref : (1, C_pad)          f32   packed conv bias
    mask_ref  : (L_pad, C_pad)      f32   0/1 per-branch time-validity mask
    wfc_ref   : (C_pad, O_pad)      f32   padded FC weight
    bfc_ref   : (1, O_pad)          f32   padded FC bias
    out_ref   : (B_blk, O_pad)      f32   padded logits
    """
    # "im2col in vregs": stack the k_max shifted views along the feature axis
    # so the conv becomes ONE MXU matmul with contraction depth K = k_max*E.
    # The concat is done in f32 (unaligned lane-dim concat of packed bf16
    # pieces is less robust to lower); the up/down casts are negligible VPU work.
    parts = [emb_ref[:, dk:dk + l_out_pad, :].astype(jnp.float32)
             for dk in range(kernel_max)]
    lhs = jnp.concatenate(parts, axis=-1).astype(jnp.bfloat16)   # (B_blk, L_pad, k*E)

    conv = jax.lax.dot_general(                                   # (B_blk, L_pad, C_pad)
        lhs, wconv_ref[...], (((2,), (0,)), ((), ())),
        preferred_element_type=jnp.float32)

    act = jnp.maximum(conv + bconv_ref[...], 0.0)   # bias + ReLU (f32)
    act = act * mask_ref[...]                       # zero invalid / padded time steps
    feat = jnp.max(act, axis=1)                     # max over time -> (B_blk, C_pad)
    # (post-ReLU zeros are safe: the max over valid positions is already >= 0)

    # FC kept in f32 (tiny matmul, better accuracy).  Equivalent to
    # torch.cat(max_out, dim=1) followed by nn.Linear.
    logits = jax.lax.dot_general(
        feat, wfc_ref[...], (((1,), (0,)), ((), ())),
        preferred_element_type=jnp.float32)
    out_ref[...] = logits + bfc_ref[...]


# --------------------------------------------------------------------------- #
# One-time parameter packing (model init; host-side numpy, no per-call XLA ops)
# --------------------------------------------------------------------------- #
def pack_cnn_params(emb_table, conv_ws, conv_bs, wfc, bfc, kernel_sizes,
                    out_channels):
    E = int(emb_table.shape[1])
    C = out_channels
    n_k = len(kernel_sizes)
    k_max = max(kernel_sizes)
    out_size = int(wfc.shape[0])
    c_pad = _round_up(n_k * C, 128)      # lane-dense channel axis
    o_pad = _round_up(out_size, 128)     # lane-dense output store

    # torch Conv2d weight is (C, 1, E, k);
    # W_flat[dk*E + e, i*C + c] = W_i[c, 0, e, dk]  (matches the in-kernel
    # feature concat order: feature index = dk*E + e).
    w_flat = np.zeros((k_max * E, c_pad), np.float32)
    b_pack = np.zeros((1, c_pad), np.float32)
    for i, k in enumerate(kernel_sizes):
        w_i = np.transpose(np.asarray(conv_ws[i])[:, 0], (2, 1, 0))   # (k, E, C)
        w_flat[:k * E, i * C:(i + 1) * C] = w_i.reshape(k * E, C)
        b_pack[0, i * C:(i + 1) * C] = np.asarray(conv_bs[i])

    # FC padding (concat order == kernel_sizes order, matching torch.cat).
    wfc_pad = np.zeros((c_pad, o_pad), np.float32)
    wfc_pad[:n_k * C, :out_size] = np.asarray(wfc).T
    bfc_pad = np.zeros((1, o_pad), np.float32)
    bfc_pad[0, :out_size] = np.asarray(bfc)

    return {
        # bf16 table so the XLA gather reads/writes bf16 (half the HBM traffic).
        "emb_table": jnp.asarray(emb_table, dtype=jnp.bfloat16),
        "w_conv": jnp.asarray(w_flat, dtype=jnp.bfloat16),
        "b_conv": jnp.asarray(b_pack),
        "w_fc": jnp.asarray(wfc_pad),
        "b_fc": jnp.asarray(bfc_pad),
    }


def _pick_batch_block(B, s_pad, E, l_out_pad, k_max, c_pad, o_pad,
                      vmem_budget_bytes=48 * 1024 * 1024):
    """Largest sublane-aligned batch tile whose per-grid-step working set fits
    a conservative VMEM budget (sized for v7x's 64 MiB per TensorCore)."""
    per_row = (2 * s_pad * E * 2                    # emb tile, bf16, double-buffered
               + l_out_pad * k_max * E * (4 + 2)    # fused LHS (f32 concat + bf16 copy)
               + 2 * l_out_pad * c_pad * 4          # conv acc + masked act, f32
               + 2 * o_pad * 4)                     # logits tile, double-buffered
    cap = max(8, min(512, (vmem_budget_bytes // max(per_row, 1)) // 8 * 8))
    b_blk = min(_round_up(B, 8), cap)
    # Keep >= 2 grid steps when the batch allows it, so the "parallel" batch
    # axis can be sharded across v7x's two TensorCores.
    if B > 8:
        b_blk = min(b_blk, _round_up(-(-B // 2), 8))
    return b_blk


# --------------------------------------------------------------------------- #
# Forward wrapper (jit this; params come from pack_cnn_params)
# --------------------------------------------------------------------------- #
def cnn_classifier_forward(tokens, params, *, kernel_sizes, out_channels,
                           output_size):
    """tokens: (batch, seq) int32 token ids. Returns (batch, output_size) f32."""
    B, S = tokens.shape
    emb_table = params["emb_table"]
    E = emb_table.shape[1]
    C = out_channels
    k_max = max(kernel_sizes)
    k_min = min(kernel_sizes)
    c_pad = params["w_conv"].shape[1]
    o_pad = params["w_fc"].shape[1]

    l_out = S - k_min + 1                         # time steps computed for all branches
    l_out_pad = _round_up(l_out, 8)               # sublane-aligned conv output length
    s_pad = _round_up(l_out_pad + k_max - 1, 8)   # covers every dk-shifted slice

    b_blk = _pick_batch_block(B, s_pad, E, l_out_pad, k_max, c_pad, o_pad)
    b_pad = _round_up(B, b_blk)

    # Embedding lookup (XLA glue, bf16 in -> bf16 out) + batch/seq zero padding.
    emb = jnp.take(emb_table, tokens, axis=0)                        # (B, S, E) bf16
    emb = jnp.pad(emb, ((0, b_pad - B), (0, s_pad - S), (0, 0)))

    # Per-branch time-validity mask; also zeroes the l_out -> l_out_pad padding
    # and the padded channels.  Built host-side -> baked as a compile-time const.
    mask_np = np.zeros((l_out_pad, c_pad), np.float32)
    for i, k in enumerate(kernel_sizes):
        valid = max(S - k + 1, 0)          # branch with k > S contributes zeros
        mask_np[:valid, i * C:(i + 1) * C] = 1.0
    mask = jnp.asarray(mask_np)

    kern = functools.partial(_cnn_kernel, kernel_max=k_max, l_out_pad=l_out_pad)

    out = pl.pallas_call(
        kern,
        out_shape=jax.ShapeDtypeStruct((b_pad, o_pad), jnp.float32),
        grid_spec=pltpu.PrefetchScalarGridSpec(
            num_scalar_prefetch=0,
            grid=(b_pad // b_blk,),
            in_specs=[
                # streamed per grid step
                pl.BlockSpec((b_blk, s_pad, E), lambda b: (b, 0, 0)),
                # grid-invariant (VMEM-resident) weights / bias / mask
                # TODO(synk): mark these pipeline_mode=pl.Buffered(1) to drop the
                # second pipeline buffer once VMEM headroom matters (large E/C).
                pl.BlockSpec((k_max * E, c_pad), lambda b: (0, 0)),
                pl.BlockSpec((1, c_pad), lambda b: (0, 0)),
                pl.BlockSpec((l_out_pad, c_pad), lambda b: (0, 0)),
                pl.BlockSpec((c_pad, o_pad), lambda b: (0, 0)),
                pl.BlockSpec((1, o_pad), lambda b: (0, 0)),
            ],
            out_specs=pl.BlockSpec((b_blk, o_pad), lambda b: (b, 0)),
        ),
        compiler_params=pltpu.CompilerParams(
            dimension_semantics=("parallel",),
            # stay well inside v7x's 64 MiB/TC VMEM; plenty for v5e/v6e too
            vmem_limit_bytes=48 * 1024 * 1024),
    )(emb, params["w_conv"], params["b_conv"], mask,
      params["w_fc"], params["b_fc"])

    return out[:B, :output_size]


# --------------------------------------------------------------------------- #
# Pure-JAX f32 reference (mirrors the PyTorch forward, eval mode)
# --------------------------------------------------------------------------- #
def _reference_forward(tokens, emb_table, conv_ws, conv_bs, wfc, bfc, kernel_sizes):
    emb = jnp.take(emb_table, tokens, axis=0)                        # (B, S, E)
    feats = []
    for w, b, k in zip(conv_ws, conv_bs, kernel_sizes):
        L = emb.shape[1] - k + 1
        win = jnp.stack([emb[:, dk:dk + L, :] for dk in range(k)], axis=-1)  # (B,L,E,k)
        conv = jnp.einsum('blek,cek->blc', win, w[:, 0]) + b                  # (B,L,C)
        feats.append(jnp.max(jax.nn.relu(conv), axis=1))                      # (B,C)
    all_out = jnp.concatenate(feats, axis=1)                         # (B, 3*C)
    return all_out @ wfc.T + bfc                                     # (B, out_size)


if __name__ == "__main__":
    # Small shapes consistent with the module.
    batch_size = 2
    seq_len = 16
    vocab_size = 50
    embedding_dim = 32
    out_channels = 8
    kernel_sizes = (3, 4, 5)
    output_size = 2

    key = jax.random.PRNGKey(0)
    k_tok, k_emb, k_cw, k_cb, k_fw, k_fb = jax.random.split(key, 6)

    tokens = jax.random.randint(k_tok, (batch_size, seq_len), 0, vocab_size, jnp.int32)
    emb_table = jax.random.normal(k_emb, (vocab_size, embedding_dim), jnp.float32) * 0.1

    cw_keys = jax.random.split(k_cw, len(kernel_sizes))
    cb_keys = jax.random.split(k_cb, len(kernel_sizes))
    conv_ws = [jax.random.normal(cw_keys[i], (out_channels, 1, embedding_dim, k),
                                 jnp.float32) * 0.1
               for i, k in enumerate(kernel_sizes)]
    conv_bs = [jax.random.normal(cb_keys[i], (out_channels,), jnp.float32) * 0.1
               for i in range(len(kernel_sizes))]

    wfc = jax.random.normal(k_fw, (output_size, len(kernel_sizes) * out_channels),
                            jnp.float32) * 0.1
    bfc = jax.random.normal(k_fb, (output_size,), jnp.float32) * 0.1

    # One-time packing (model init) -- outside the per-call jitted path.
    params = pack_cnn_params(emb_table, conv_ws, conv_bs, wfc, bfc,
                             kernel_sizes, out_channels)

    fwd = jax.jit(functools.partial(cnn_classifier_forward,
                                    kernel_sizes=kernel_sizes,
                                    out_channels=out_channels,
                                    output_size=output_size))
    logits = jax.block_until_ready(fwd(tokens, params))

    ref = _reference_forward(tokens, emb_table, conv_ws, conv_bs, wfc, bfc, kernel_sizes)
    assert logits.shape == (batch_size, output_size)
    # bf16 embeddings/conv-weights on the MXU (f32 accumulate, f32 FC) vs f32 ref.
    assert jnp.allclose(logits, ref, atol=2e-2, rtol=2e-2), (logits, ref)

    print("KERNEL_OK")
</pallas_src>

<mosaic_0001>
module attributes {stable_mosaic.version = 11 : i64} {
  func.func @_cnn_kernel(%arg0: i32, %arg1: memref<8x24x32xbf16, #tpu.memory_space<vmem>>, %arg2: memref<160x128xbf16, #tpu.memory_space<vmem>>, %arg3: memref<1x128xf32, #tpu.memory_space<vmem>>, %arg4: memref<16x128xf32, #tpu.memory_space<vmem>>, %arg5: memref<128x128xf32, #tpu.memory_space<vmem>>, %arg6: memref<1x128xf32, #tpu.memory_space<vmem>>, %arg7: memref<8x128xf32, #tpu.memory_space<vmem>>) attributes {dimension_semantics = [#tpu.dimension_semantics<parallel>], iteration_bounds = array<i64: 1>, scalar_prefetch = 0 : i64, scratch_operands = 0 : i64, tpu.core_type = #tpu.core_type<tc>, window_params = [{transform_indices = @transform_0, window_bounds = array<i64: 8, 24, 32>}, {pipeline_mode = #tpu.pipeline_mode<synchronous>, transform_indices = @transform_1, window_bounds = array<i64: 160, 128>}, {pipeline_mode = #tpu.pipeline_mode<synchronous>, transform_indices = @transform_2, window_bounds = array<i64: 1, 128>}, {pipeline_mode = #tpu.pipeline_mode<synchronous>, transform_indices = @transform_3, window_bounds = array<i64: 16, 128>}, {pipeline_mode = #tpu.pipeline_mode<synchronous>, transform_indices = @transform_4, window_bounds = array<i64: 128, 128>}, {pipeline_mode = #tpu.pipeline_mode<synchronous>, transform_indices = @transform_5, window_bounds = array<i64: 1, 128>}, {transform_indices = @transform_6, window_bounds = array<i64: 8, 128>}]} {
    %c0 = arith.constant 0 : index
    %c0_0 = arith.constant 0 : index
    %c0_1 = arith.constant 0 : index
    %0 = vector.load %arg1[%c0, %c0_0, %c0_1] : memref<8x24x32xbf16, #tpu.memory_space<vmem>>, vector<8x16x32xbf16>
    %1 = arith.extf %0 : vector<8x16x32xbf16> to vector<8x16x32xf32>
    %c0_2 = arith.constant 0 : index
    %c1 = arith.constant 1 : index
    %c0_3 = arith.constant 0 : index
    %2 = vector.load %arg1[%c0_2, %c1, %c0_3] : memref<8x24x32xbf16, #tpu.memory_space<vmem>>, vector<8x16x32xbf16>
    %3 = arith.extf %2 : vector<8x16x32xbf16> to vector<8x16x32xf32>
    %c0_4 = arith.constant 0 : index
    %c2 = arith.constant 2 : index
    %c0_5 = arith.constant 0 : index
    %4 = vector.load %arg1[%c0_4, %c2, %c0_5] : memref<8x24x32xbf16, #tpu.memory_space<vmem>>, vector<8x16x32xbf16>
    %5 = arith.extf %4 : vector<8x16x32xbf16> to vector<8x16x32xf32>
    %c0_6 = arith.constant 0 : index
    %c3 = arith.constant 3 : index
    %c0_7 = arith.constant 0 : index
    %6 = vector.load %arg1[%c0_6, %c3, %c0_7] : memref<8x24x32xbf16, #tpu.memory_space<vmem>>, vector<8x16x32xbf16>
    %7 = arith.extf %6 : vector<8x16x32xbf16> to vector<8x16x32xf32>
    %c0_8 = arith.constant 0 : index
    %c4 = arith.constant 4 : index
    %c0_9 = arith.constant 0 : index
    %8 = vector.load %arg1[%c0_8, %c4, %c0_9] : memref<8x24x32xbf16, #tpu.memory_space<vmem>>, vector<8x16x32xbf16>
    %9 = arith.extf %8 : vector<8x16x32xbf16> to vector<8x16x32xf32>
    %10 = tpu.concatenate %1, %3, %5, %7, %9 in 2 : vector<8x16x32xf32>, vector<8x16x32xf32>, vector<8x16x32xf32>, vector<8x16x32xf32>, vector<8x16x32xf32> -> vector<8x16x160xf32>
    %11 = arith.truncf %10 : vector<8x16x160xf32> to vector<8x16x160xbf16>
    %c0_10 = arith.constant 0 : index
    %c0_11 = arith.constant 0 : index
    %12 = vector.load %arg2[%c0_10, %c0_11] : memref<160x128xbf16, #tpu.memory_space<vmem>>, vector<160x128xbf16>
    %cst = arith.constant dense<0.000000e+00> : vector<8x16x128xf32>
    %13 = tpu.matmul %11, %12, %cst {dimension_numbers = #tpu.dot_dimension_numbers<[2], [0], [0, 1], [1], [0, 0, 0, 1, 1, 1], [], []>} : vector<8x16x160xbf16>, vector<160x128xbf16>, vector<8x16x128xf32> -> vector<8x16x128xf32>
    %c0_12 = arith.constant 0 : index
    %c0_13 = arith.constant 0 : index
    %14 = vector.load %arg3[%c0_12, %c0_13] : memref<1x128xf32, #tpu.memory_space<vmem>>, vector<1x128xf32>
    %15 = vector.shape_cast %14 : vector<1x128xf32> to vector<1x1x128xf32>
    %16 = vector.broadcast %15 : vector<1x1x128xf32> to vector<8x16x128xf32>
    %17 = arith.addf %13, %16 : vector<8x16x128xf32>
    %cst_14 = arith.constant 0.000000e+00 : f32
    %18 = vector.broadcast %cst_14 : f32 to vector<8x16x128xf32>
    %19 = arith.maximumf %17, %18 : vector<8x16x128xf32>
    %c0_15 = arith.constant 0 : index
    %c0_16 = arith.constant 0 : index
    %20 = vector.load %arg4[%c0_15, %c0_16] : memref<16x128xf32, #tpu.memory_space<vmem>>, vector<16x128xf32>
    %21 = vector.shape_cast %20 : vector<16x128xf32> to vector<1x16x128xf32>
    %22 = vector.broadcast %21 : vector<1x16x128xf32> to vector<8x16x128xf32>
    %23 = arith.mulf %19, %22 : vector<8x16x128xf32>
    %cst_17 = arith.constant dense<0xFF800000> : vector<8x128xf32>
    %24 = vector.multi_reduction <maximumf>, %23, %cst_17 [1] : vector<8x16x128xf32> to vector<8x128xf32>
    %c0_18 = arith.constant 0 : index
    %c0_19 = arith.constant 0 : index
    %25 = vector.load %arg5[%c0_18, %c0_19] : memref<128x128xf32, #tpu.memory_space<vmem>>, vector<128x128xf32>
    %cst_20 = arith.constant dense<0.000000e+00> : vector<8x128xf32>
    %26 = tpu.matmul %24, %25, %cst_20 {dimension_numbers = #tpu.dot_dimension_numbers<[1], [0], [0], [1], [0, 0, 1, 1], [], []>} : vector<8x128xf32>, vector<128x128xf32>, vector<8x128xf32> -> vector<8x128xf32>
    %c0_21 = arith.constant 0 : index
    %c0_22 = arith.constant 0 : index
    %27 = vector.load %arg6[%c0_21, %c0_22] : memref<1x128xf32, #tpu.memory_space<vmem>>, vector<1x128xf32>
    %28 = vector.broadcast %27 : vector<1x128xf32> to vector<8x128xf32>
    %29 = arith.addf %26, %28 : vector<8x128xf32>
    %c0_23 = arith.constant 0 : index
    %c0_24 = arith.constant 0 : index
    %30 = vector.load %arg7[%c0_23, %c0_24] : memref<8x128xf32, #tpu.memory_space<vmem>>, vector<8x128xf32>
    tpu.vector_store %arg7[%c0_23, %c0_24], %29 {strides = array<i32>} : memref<8x128xf32, #tpu.memory_space<vmem>>, vector<8x128xf32>,
    return
  }
  func.func @transform_0(%arg0: i32) -> (i32, i32, i32) {
    %c0_i32 = arith.constant 0 : i32
    %c0_i32_0 = arith.constant 0 : i32
    %c0_i32_1 = arith.constant 0 : i32
    return %arg0, %c0_i32, %c0_i32_0 : i32, i32, i32
  }
  func.func @transform_1(%arg0: i32) -> (i32, i32) {
    %c0_i32 = arith.constant 0 : i32
    %c0_i32_0 = arith.constant 0 : i32
    %c0_i32_1 = arith.constant 0 : i32
    return %c0_i32, %c0_i32_0 : i32, i32
  }
  func.func @transform_2(%arg0: i32) -> (i32, i32) {
    %c0_i32 = arith.constant 0 : i32
    %c0_i32_0 = arith.constant 0 : i32
    %c0_i32_1 = arith.constant 0 : i32
    return %c0_i32, %c0_i32_0 : i32, i32
  }
  func.func @transform_3(%arg0: i32) -> (i32, i32) {
    %c0_i32 = arith.constant 0 : i32
    %c0_i32_0 = arith.constant 0 : i32
    %c0_i32_1 = arith.constant 0 : i32
    return %c0_i32, %c0_i32_0 : i32, i32
  }
  func.func @transform_4(%arg0: i32) -> (i32, i32) {
    %c0_i32 = arith.constant 0 : i32
    %c0_i32_0 = arith.constant 0 : i32
    %c0_i32_1 = arith.constant 0 : i32
    return %c0_i32, %c0_i32_0 : i32, i32
  }
  func.func @transform_5(%arg0: i32) -> (i32, i32) {
    %c0_i32 = arith.constant 0 : i32
    %c0_i32_0 = arith.constant 0 : i32
    %c0_i32_1 = arith.constant 0 : i32
    return %c0_i32, %c0_i32_0 : i32, i32
  }
  func.func @transform_6(%arg0: i32) -> (i32, i32) {
    %c0_i32 = arith.constant 0 : i32
    %c0_i32_0 = arith.constant 0 : i32
    return %arg0, %c0_i32 : i32, i32
  }
}

</mosaic_0001>

<llo_original>
// kernel: cnn_classifier_forward.1
$region0: #{cnn_classifier_forward.1}
  #allocation0 [shape = 'u32[]', space=smem, size = 0x4, offset = 0x4, fixed_abs, tag = 'smem constant byte address 0x4 - core index']
  #allocation1 [shape = 'u32[144,128]{1,0:T(1,128)}', space=vmem, size = 0x12000, scoped, tag = 'internal scratch']
  %s0 = inlined_call_operand.vmem [shape: bf16[8,24,32], index: 0, kind: input, shape index: {}]
  %s1 = inlined_call_operand.vmem [shape: bf16[160,128], index: 1, kind: input, shape index: {}]
  %s2 = inlined_call_operand.vmem [shape: f32[1,128], index: 2, kind: input, shape index: {}]
  %s3 = inlined_call_operand.vmem [shape: f32[16,128], index: 3, kind: input, shape index: {}]
  %s4 = inlined_call_operand.vmem [shape: f32[128,128], index: 4, kind: input, shape index: {}]
  %s5 = inlined_call_operand.vmem [shape: f32[1,128], index: 5, kind: input, shape index: {}]
  %s6 = inlined_call_operand.vmem [shape: f32[8,128], index: 6, kind: output, shape index: {}]
  %s7 = sld [smem:[#allocation0]]
  $region34: #{cnn_classifier_forward.1} parent=0
    _
  %s9 = ssub.s32 1, %s7
  %s10 = scalar_select 0, %s9, %s7
  // Predicated region
  $region2: #{cnn_classifier_forward.1} parent=0 // pred_check
    _
  $region3: #{cnn_classifier_forward.1} parent=0 // pred_check_branch
    %12 = sbr.rel (0) target = $region5
  $region4: #{cnn_classifier_forward.1} parent=0 // pred_region
    _
  $region5: #{cnn_classifier_forward.1} parent=0 // pred_fallthru
    _
  // Predicated region
  $region6: #{cnn_classifier_forward.1} parent=0 // pred_check
    _
  $region7: #{cnn_classifier_forward.1} parent=0 // pred_check_branch
    %14 = sbr.rel (0) target = $region9
  $region8: #{cnn_classifier_forward.1} parent=0 // pred_region
    _
  $region9: #{cnn_classifier_forward.1} parent=0 // pred_fallthru
    _
  // Predicated region
  $region10: #{cnn_classifier_forward.1} parent=0 // pred_check
    _
  $region11: #{cnn_classifier_forward.1} parent=0 // pred_check_branch
    %16 = sbr.rel (0) target = $region13
  $region12: #{cnn_classifier_forward.1} parent=0 // pred_region
    _
  $region13: #{cnn_classifier_forward.1} parent=0 // pred_fallthru
    _
  // Predicated region
  $region14: #{cnn_classifier_forward.1} parent=0 // pred_check
    _
  $region15: #{cnn_classifier_forward.1} parent=0 // pred_check_branch
    %18 = sbr.rel (0) target = $region17
  $region16: #{cnn_classifier_forward.1} parent=0 // pred_region
    _
  $region17: #{cnn_classifier_forward.1} parent=0 // pred_fallthru
    _
  // Predicated region
  $region18: #{cnn_classifier_forward.1} parent=0 // pred_check
    _
  $region19: #{cnn_classifier_forward.1} parent=0 // pred_check_branch
    %20 = sbr.rel (0) target = $region21
  $region20: #{cnn_classifier_forward.1} parent=0 // pred_region
    _
  $region21: #{cnn_classifier_forward.1} parent=0 // pred_fallthru
    _
  // Predicated region
  $region22: #{cnn_classifier_forward.1} parent=0 // pred_check
    _
  $region23: #{cnn_classifier_forward.1} parent=0 // pred_check_branch
    %22 = sbr.rel (0) target = $region25
  $region24: #{cnn_classifier_forward.1} parent=0 // pred_region
    _
  $region25: #{cnn_classifier_forward.1} parent=0 // pred_fallthru
    _
  %v24 = vld [vmem:[%s0] sm:$0xf]
  %v25 = vld [vmem:[%s0 + $0x4] sm:$0xf]
  %v26 = vld [vmem:[%s0 + $0xc] sm:$0xf]
  %v27 = vld [vmem:[%s0 + $0x10] sm:$0xf]
  %v28 = vld [vmem:[%s0 + $0x18] sm:$0xf]
  %v29 = vld [vmem:[%s0 + $0x1c] sm:$0xf]
  %v30 = vld [vmem:[%s0 + $0x24] sm:$0xf]
  %v31 = vld [vmem:[%s0 + $0x28] sm:$0xf]
  %v32 = vld [vmem:[%s0 + $0x30] sm:$0xf]
  %v33 = vld [vmem:[%s0 + $0x34] sm:$0xf]
  %v34 = vld [vmem:[%s0 + $0x3c] sm:$0xf]
  %v35 = vld [vmem:[%s0 + $0x40] sm:$0xf]
  %v36 = vld [vmem:[%s0 + $0x48] sm:$0xf]
  %v37 = vld [vmem:[%s0 + $0x4c] sm:$0xf]
  %v38 = vld [vmem:[%s0 + $0x54] sm:$0xf]
  %v39 = vld [vmem:[%s0 + $0x58] sm:$0xf]
  %v40 = vunpack.c.l.bf16 %v24
  %v41 = vunpack.c.l.bf16 %v25
  %v42 = vunpack.c.l.bf16 %v26
  %v43 = vunpack.c.l.bf16 %v27
  %v44 = vunpack.c.l.bf16 %v28
  %v45 = vunpack.c.l.bf16 %v29
  %v46 = vunpack.c.l.bf16 %v30
  %v47 = vunpack.c.l.bf16 %v31
  %v48 = vunpack.c.l.bf16 %v32
  %v49 = vunpack.c.l.bf16 %v33
  %v50 = vunpack.c.l.bf16 %v34
  %v51 = vunpack.c.l.bf16 %v35
  %v52 = vunpack.c.l.bf16 %v36
  %v53 = vunpack.c.l.bf16 %v37
  %v54 = vunpack.c.l.bf16 %v38
  %v55 = vunpack.c.l.bf16 %v39
  %v56 = vld [vmem:[%s0 + $0x8] sm:$0x1]
  %v57 = vld [vmem:[%s0 + $0x14] sm:$0x1]
  %v58 = vld [vmem:[%s0 + $0x20] sm:$0x1]
  %v59 = vld [vmem:[%s0 + $0x2c] sm:$0x1]
  %v60 = vld [vmem:[%s0 + $0x38] sm:$0x1]
  %v61 = vld [vmem:[%s0 + $0x44] sm:$0x1]
  %v62 = vld [vmem:[%s0 + $0x50] sm:$0x1]
  %v63 = vld [vmem:[%s0 + $0x5c] sm:$0x1]
  %v64 = vunpack.c.l.bf16 %v56
  %v65 = vunpack.c.l.bf16 %v57
  %v66 = vunpack.c.l.bf16 %v58
  %v67 = vunpack.c.l.bf16 %v59
  %v68 = vunpack.c.l.bf16 %v60
  %v69 = vunpack.c.l.bf16 %v61
  %v70 = vunpack.c.l.bf16 %v62
  %v71 = vunpack.c.l.bf16 %v63
  %v72 = vld [vmem:[%s0] sm:$0xe]
  %v73 = vld [vmem:[%s0 + $0xc] sm:$0xe]
  %v74 = vld [vmem:[%s0 + $0x18] sm:$0xe]
  %v75 = vld [vmem:[%s0 + $0x24] sm:$0xe]
  %v76 = vld [vmem:[%s0 + $0x30] sm:$0xe]
  %v77 = vld [vmem:[%s0 + $0x3c] sm:$0xe]
  %v78 = vld [vmem:[%s0 + $0x48] sm:$0xe]
  %v79 = vld [vmem:[%s0 + $0x54] sm:$0xe]
  %v80 = vunpack.c.l.bf16 %v72
  %v81 = vunpack.c.l.bf16 %v73
  %v82 = vunpack.c.l.bf16 %v74
  %v83 = vunpack.c.l.bf16 %v75
  %v84 = vunpack.c.l.bf16 %v76
  %v85 = vunpack.c.l.bf16 %v77
  %v86 = vunpack.c.l.bf16 %v78
  %v87 = vunpack.c.l.bf16 %v79
  %v88 = vld [vmem:[%s0 + $0x8] sm:$0x3]
  %v89 = vld [vmem:[%s0 + $0x14] sm:$0x3]
  %v90 = vld [vmem:[%s0 + $0x20] sm:$0x3]
  %v91 = vld [vmem:[%s0 + $0x2c] sm:$0x3]
  %v92 = vld [vmem:[%s0 + $0x38] sm:$0x3]
  %v93 = vld [vmem:[%s0 + $0x44] sm:$0x3]
  %v94 = vld [vmem:[%s0 + $0x50] sm:$0x3]
  %v95 = vld [vmem:[%s0 + $0x5c] sm:$0x3]
  %v96 = vunpack.c.l.bf16 %v88
  %v97 = vunpack.c.l.bf16 %v89
  %v98 = vunpack.c.l.bf16 %v90
  %v99 = vunpack.c.l.bf16 %v91
  %v100 = vunpack.c.l.bf16 %v92
  %v101 = vunpack.c.l.bf16 %v93
  %v102 = vunpack.c.l.bf16 %v94
  %v103 = vunpack.c.l.bf16 %v95
  %v104 = vld [vmem:[%s0] sm:$0xc]
  %v105 = vld [vmem:[%s0 + $0xc] sm:$0xc]
  %v106 = vld [vmem:[%s0 + $0x18] sm:$0xc]
  %v107 = vld [vmem:[%s0 + $0x24] sm:$0xc]
  %v108 = vld [vmem:[%s0 + $0x30] sm:$0xc]
  %v109 = vld [vmem:[%s0 + $0x3c] sm:$0xc]
  %v110 = vld [vmem:[%s0 + $0x48] sm:$0xc]
  %v111 = vld [vmem:[%s0 + $0x54] sm:$0xc]
  %v112 = vunpack.c.l.bf16 %v104
  %v113 = vunpack.c.l.bf16 %v105
  %v114 = vunpack.c.l.bf16 %v106
  %v115 = vunpack.c.l.bf16 %v107
  %v116 = vunpack.c.l.bf16 %v108
  %v117 = vunpack.c.l.bf16 %v109
  %v118 = vunpack.c.l.bf16 %v110
  %v119 = vunpack.c.l.bf16 %v111
  %vm144 = vcmask 1046528
  %v145 = vrot.slane %v40, 1
  %v146 = vrot.slane %v41, 1
  %v147 = vsel %vm144, %v145, %v146
  %v148 = vrot.slane %v64, 1
  %v149 = vsel %vm144, %v146, %v148
  %v150 = vrot.slane %v42, 1
  %v151 = vrot.slane %v43, 1
  %v152 = vsel %vm144, %v150, %v151
  %v153 = vrot.slane %v65, 1
  %v154 = vsel %vm144, %v151, %v153
  %v155 = vrot.slane %v44, 1
  %v156 = vrot.slane %v45, 1
  %v157 = vsel %vm144, %v155, %v156
  %v158 = vrot.slane %v66, 1
  %v159 = vsel %vm144, %v156, %v158
  %v160 = vrot.slane %v46, 1
  %v161 = vrot.slane %v47, 1
  %v162 = vsel %vm144, %v160, %v161
  %v163 = vrot.slane %v67, 1
  %v164 = vsel %vm144, %v161, %v163
  %v165 = vrot.slane %v48, 1
  %v166 = vrot.slane %v49, 1
  %v167 = vsel %vm144, %v165, %v166
  %v168 = vrot.slane %v68, 1
  %v169 = vsel %vm144, %v166, %v168
  %v170 = vrot.slane %v50, 1
  %v171 = vrot.slane %v51, 1
  %v172 = vsel %vm144, %v170, %v171
  %v173 = vrot.slane %v69, 1
  %v174 = vsel %vm144, %v171, %v173
  %v175 = vrot.slane %v52, 1
  %v176 = vrot.slane %v53, 1
  %v177 = vsel %vm144, %v175, %v176
  %v178 = vrot.slane %v70, 1
  %v179 = vsel %vm144, %v176, %v178
  %v180 = vrot.slane %v54, 1
  %v181 = vrot.slane %v55, 1
  %v182 = vsel %vm144, %v180, %v181
  %v183 = vrot.slane %v71, 1
  %v184 = vsel %vm144, %v181, %v183
  %185 = vrot.lane.b32.xlu0 %v147, 32
  %v186 = vpop.permute.xlu0 %185
  %187 = vrot.lane.b32.xlu0 %v149, 32
  %v188 = vpop.permute.xlu0 %187
  %189 = vrot.lane.b32.xlu0 %v152, 32
  %v190 = vpop.permute.xlu0 %189
  %191 = vrot.lane.b32.xlu0 %v154, 32
  %v192 = vpop.permute.xlu0 %191
  %193 = vrot.lane.b32.xlu0 %v157, 32
  %v194 = vpop.permute.xlu0 %193
  %195 = vrot.lane.b32.xlu0 %v159, 32
  %v196 = vpop.permute.xlu0 %195
  %197 = vrot.lane.b32.xlu0 %v162, 32
  %v198 = vpop.permute.xlu0 %197
  %199 = vrot.lane.b32.xlu0 %v164, 32
  %v200 = vpop.permute.xlu0 %199
  %201 = vrot.lane.b32.xlu0 %v167, 32
  %v202 = vpop.permute.xlu0 %201
  %203 = vrot.lane.b32.xlu0 %v169, 32
  %v204 = vpop.permute.xlu0 %203
  %205 = vrot.lane.b32.xlu0 %v172, 32
  %v206 = vpop.permute.xlu0 %205
  %207 = vrot.lane.b32.xlu0 %v174, 32
  %v208 = vpop.permute.xlu0 %207
  %209 = vrot.lane.b32.xlu0 %v177, 32
  %v210 = vpop.permute.xlu0 %209
  %211 = vrot.lane.b32.xlu0 %v179, 32
  %v212 = vpop.permute.xlu0 %211
  %213 = vrot.lane.b32.xlu0 %v182, 32
  %v214 = vpop.permute.xlu0 %213
  %215 = vrot.lane.b32.xlu0 %v184, 32
  %v216 = vpop.permute.xlu0 %215
  %vm241 = vcmask 1045504
  %v242 = vrot.slane %v80, 2
  %v243 = vrot.slane %v41, 2
  %v244 = vsel %vm241, %v242, %v243
  %v245 = vrot.slane %v64, 2
  %v246 = vsel %vm241, %v243, %v245
  %v247 = vrot.slane %v81, 2
  %v248 = vrot.slane %v43, 2
  %v249 = vsel %vm241, %v247, %v248
  %v250 = vrot.slane %v65, 2
  %v251 = vsel %vm241, %v248, %v250
  %v252 = vrot.slane %v82, 2
  %v253 = vrot.slane %v45, 2
  %v254 = vsel %vm241, %v252, %v253
  %v255 = vrot.slane %v66, 2
  %v256 = vsel %vm241, %v253, %v255
  %v257 = vrot.slane %v83, 2
  %v258 = vrot.slane %v47, 2
  %v259 = vsel %vm241, %v257, %v258
  %v260 = vrot.slane %v67, 2
  %v261 = vsel %vm241, %v258, %v260
  %v262 = vrot.slane %v84, 2
  %v263 = vrot.slane %v49, 2
  %v264 = vsel %vm241, %v262, %v263
  %v265 = vrot.slane %v68, 2
  %v266 = vsel %vm241, %v263, %v265
  %v267 = vrot.slane %v85, 2
  %v268 = vrot.slane %v51, 2
  %v269 = vsel %vm241, %v267, %v268
  %v270 = vrot.slane %v69, 2
  %v271 = vsel %vm241, %v268, %v270
  %v272 = vrot.slane %v86, 2
  %v273 = vrot.slane %v53, 2
  %v274 = vsel %vm241, %v272, %v273
  %v275 = vrot.slane %v70, 2
  %v276 = vsel %vm241, %v273, %v275
  %v277 = vrot.slane %v87, 2
  %v278 = vrot.slane %v55, 2
  %v279 = vsel %vm241, %v277, %v278
  %v280 = vrot.slane %v71, 2
  %v281 = vsel %vm241, %v278, %v280
  %282 = vrot.lane.b32.xlu0 %v244, 64
  %v283 = vpop.permute.xlu0 %282
  %284 = vrot.lane.b32.xlu0 %v246, 64
  %v285 = vpop.permute.xlu0 %284
  %286 = vrot.lane.b32.xlu0 %v249, 64
  %v287 = vpop.permute.xlu0 %286
  %288 = vrot.lane.b32.xlu0 %v251, 64
  %v289 = vpop.permute.xlu0 %288
  %290 = vrot.lane.b32.xlu0 %v254, 64
  %v291 = vpop.permute.xlu0 %290
  %292 = vrot.lane.b32.xlu0 %v256, 64
  %v293 = vpop.permute.xlu0 %292
  %294 = vrot.lane.b32.xlu0 %v259, 64
  %v295 = vpop.permute.xlu0 %294
  %296 = vrot.lane.b32.xlu0 %v261, 64
  %v297 = vpop.permute.xlu0 %296
  %298 = vrot.lane.b32.xlu0 %v264, 64
  %v299 = vpop.permute.xlu0 %298
  %300 = vrot.lane.b32.xlu0 %v266, 64
  %v301 = vpop.permute.xlu0 %300
  %302 = vrot.lane.b32.xlu0 %v269, 64
  %v303 = vpop.permute.xlu0 %302
  %304 = vrot.lane.b32.xlu0 %v271, 64
  %v305 = vpop.permute.xlu0 %304
  %306 = vrot.lane.b32.xlu0 %v274, 64
  %v307 = vpop.permute.xlu0 %306
  %308 = vrot.lane.b32.xlu0 %v276, 64
  %v309 = vpop.permute.xlu0 %308
  %310 = vrot.lane.b32.xlu0 %v279, 64
  %v311 = vpop.permute.xlu0 %310
  %312 = vrot.lane.b32.xlu0 %v281, 64
  %v313 = vpop.permute.xlu0 %312
  %vm338 = vcmask 1044480
  %v339 = vrot.slane %v80, 3
  %v340 = vrot.slane %v41, 3
  %v341 = vsel %vm338, %v339, %v340
  %v342 = vrot.slane %v96, 3
  %v343 = vsel %vm338, %v340, %v342
  %v344 = vrot.slane %v81, 3
  %v345 = vrot.slane %v43, 3
  %v346 = vsel %vm338, %v344, %v345
  %v347 = vrot.slane %v97, 3
  %v348 = vsel %vm338, %v345, %v347
  %v349 = vrot.slane %v82, 3
  %v350 = vrot.slane %v45, 3
  %v351 = vsel %vm338, %v349, %v350
  %v352 = vrot.slane %v98, 3
  %v353 = vsel %vm338, %v350, %v352
  %v354 = vrot.slane %v83, 3
  %v355 = vrot.slane %v47, 3
  %v356 = vsel %vm338, %v354, %v355
  %v357 = vrot.slane %v99, 3
  %v358 = vsel %vm338, %v355, %v357
  %v359 = vrot.slane %v84, 3
  %v360 = vrot.slane %v49, 3
  %v361 = vsel %vm338, %v359, %v360
  %v362 = vrot.slane %v100, 3
  %v363 = vsel %vm338, %v360, %v362
  %v364 = vrot.slane %v85, 3
  %v365 = vrot.slane %v51, 3
  %v366 = vsel %vm338, %v364, %v365
  %v367 = vrot.slane %v101, 3
  %v368 = vsel %vm338, %v365, %v367
  %v369 = vrot.slane %v86, 3
  %v370 = vrot.slane %v53, 3
  %v371 = vsel %vm338, %v369, %v370
  %v372 = vrot.slane %v102, 3
  %v373 = vsel %vm338, %v370, %v372
  %v374 = vrot.slane %v87, 3
  %v375 = vrot.slane %v55, 3
  %v376 = vsel %vm338, %v374, %v375
  %v377 = vrot.slane %v103, 3
  %v378 = vsel %vm338, %v375, %v377
  %379 = vrot.lane.b32.xlu0 %v341, 96
  %v380 = vpop.permute.xlu0 %379
  %381 = vrot.lane.b32.xlu0 %v343, 96
  %v382 = vpop.permute.xlu0 %381
  %383 = vrot.lane.b32.xlu0 %v346, 96
  %v384 = vpop.permute.xlu0 %383
  %385 = vrot.lane.b32.xlu0 %v348, 96
  %v386 = vpop.permute.xlu0 %385
  %387 = vrot.lane.b32.xlu0 %v351, 96
  %v388 = vpop.permute.xlu0 %387
  %389 = vrot.lane.b32.xlu0 %v353, 96
  %v390 = vpop.permute.xlu0 %389
  %391 = vrot.lane.b32.xlu0 %v356, 96
  %v392 = vpop.permute.xlu0 %391
  %393 = vrot.lane.b32.xlu0 %v358, 96
  %v394 = vpop.permute.xlu0 %393
  %395 = vrot.lane.b32.xlu0 %v361, 96
  %v396 = vpop.permute.xlu0 %395
  %397 = vrot.lane.b32.xlu0 %v363, 96
  %v398 = vpop.permute.xlu0 %397
  %399 = vrot.lane.b32.xlu0 %v366, 96
  %v400 = vpop.permute.xlu0 %399
  %401 = vrot.lane.b32.xlu0 %v368, 96
  %v402 = vpop.permute.xlu0 %401
  %403 = vrot.lane.b32.xlu0 %v371, 96
  %v404 = vpop.permute.xlu0 %403
  %405 = vrot.lane.b32.xlu0 %v373, 96
  %v406 = vpop.permute.xlu0 %405
  %407 = vrot.lane.b32.xlu0 %v376, 96
  %v408 = vpop.permute.xlu0 %407
  %409 = vrot.lane.b32.xlu0 %v378, 96
  %v410 = vpop.permute.xlu0 %409
  %vm435 = vcmask 1043456
  %v436 = vrot.slane %v112, 4
  %v437 = vrot.slane %v41, 4
  %v438 = vsel %vm435, %v436, %v437
  %v439 = vrot.slane %v96, 4
  %v440 = vsel %vm435, %v437, %v439
  %v441 = vrot.slane %v113, 4
  %v442 = vrot.slane %v43, 4
  %v443 = vsel %vm435, %v441, %v442
  %v444 = vrot.slane %v97, 4
  %v445 = vsel %vm435, %v442, %v444
  %v446 = vrot.slane %v114, 4
  %v447 = vrot.slane %v45, 4
  %v448 = vsel %vm435, %v446, %v447
  %v449 = vrot.slane %v98, 4
  %v450 = vsel %vm435, %v447, %v449
  %v451 = vrot.slane %v115, 4
  %v452 = vrot.slane %v47, 4
  %v453 = vsel %vm435, %v451, %v452
  %v454 = vrot.slane %v99, 4
  %v455 = vsel %vm435, %v452, %v454
  %v456 = vrot.slane %v116, 4
  %v457 = vrot.slane %v49, 4
  %v458 = vsel %vm435, %v456, %v457
  %v459 = vrot.slane %v100, 4
  %v460 = vsel %vm435, %v457, %v459
  %v461 = vrot.slane %v117, 4
  %v462 = vrot.slane %v51, 4
  %v463 = vsel %vm435, %v461, %v462
  %v464 = vrot.slane %v101, 4
  %v465 = vsel %vm435, %v462, %v464
  %v466 = vrot.slane %v118, 4
  %v467 = vrot.slane %v53, 4
  %v468 = vsel %vm435, %v466, %v467
  %v469 = vrot.slane %v102, 4
  %v470 = vsel %vm435, %v467, %v469
  %v471 = vrot.slane %v119, 4
  %v472 = vrot.slane %v55, 4
  %v473 = vsel %vm435, %v471, %v472
  %v474 = vrot.slane %v103, 4
  %v475 = vsel %vm435, %v472, %v474
  %vm492 = vcmask 261120
  %v493 = vsel %vm492, %v40, %v186
  %v494 = vsel %vm492, %v41, %v188
  %v495 = vsel %vm492, %v42, %v190
  %v496 = vsel %vm492, %v43, %v192
  %v497 = vsel %vm492, %v44, %v194
  %v498 = vsel %vm492, %v45, %v196
  %v499 = vsel %vm492, %v46, %v198
  %v500 = vsel %vm492, %v47, %v200
  %v501 = vsel %vm492, %v48, %v202
  %v502 = vsel %vm492, %v49, %v204
  %v503 = vsel %vm492, %v50, %v206
  %v504 = vsel %vm492, %v51, %v208
  %v505 = vsel %vm492, %v52, %v210
  %v506 = vsel %vm492, %v53, %v212
  %v507 = vsel %vm492, %v54, %v214
  %v508 = vsel %vm492, %v55, %v216
  %vm509 = vcmask 523264
  %v510 = vsel %vm509, %v493, %v283
  %v511 = vsel %vm509, %v494, %v285
  %v512 = vsel %vm509, %v495, %v287
  %v513 = vsel %vm509, %v496, %v289
  %v514 = vsel %vm509, %v497, %v291
  %v515 = vsel %vm509, %v498, %v293
  %v516 = vsel %vm509, %v499, %v295
  %v517 = vsel %vm509, %v500, %v297
  %v518 = vsel %vm509, %v501, %v299
  %v519 = vsel %vm509, %v502, %v301
  %v520 = vsel %vm509, %v503, %v303
  %v521 = vsel %vm509, %v504, %v305
  %v522 = vsel %vm509, %v505, %v307
  %v523 = vsel %vm509, %v506, %v309
  %v524 = vsel %vm509, %v507, %v311
  %v525 = vsel %vm509, %v508, %v313
  %vm526 = vcmask 785408
  %v527 = vsel %vm526, %v510, %v380
  %v528 = vsel %vm526, %v511, %v382
  %v529 = vsel %vm526, %v512, %v384
  %v530 = vsel %vm526, %v513, %v386
  %v531 = vsel %vm526, %v514, %v388
  %v532 = vsel %vm526, %v515, %v390
  %v533 = vsel %vm526, %v516, %v392
  %v534 = vsel %vm526, %v517, %v394
  %v535 = vsel %vm526, %v518, %v396
  %v536 = vsel %vm526, %v519, %v398
  %v537 = vsel %vm526, %v520, %v400
  %v538 = vsel %vm526, %v521, %v402
  %v539 = vsel %vm526, %v522, %v404
  %v540 = vsel %vm526, %v523, %v406
  %v541 = vsel %vm526, %v524, %v408
  %v542 = vsel %vm526, %v525, %v410
  %v543 = vpack.c.bf16 %v528, %v527
  %v544 = vpack.c.bf16 %v440, %v438
  %v545 = vpack.c.bf16 %v530, %v529
  %v546 = vpack.c.bf16 %v445, %v443
  %v547 = vpack.c.bf16 %v532, %v531
  %v548 = vpack.c.bf16 %v450, %v448
  %v549 = vpack.c.bf16 %v534, %v533
  %v550 = vpack.c.bf16 %v455, %v453
  %v551 = vpack.c.bf16 %v536, %v535
  %v552 = vpack.c.bf16 %v460, %v458
  %v553 = vpack.c.bf16 %v538, %v537
  %v554 = vpack.c.bf16 %v465, %v463
  %v555 = vpack.c.bf16 %v540, %v539
  %v556 = vpack.c.bf16 %v470, %v468
  %v557 = vpack.c.bf16 %v542, %v541
  %v558 = vpack.c.bf16 %v475, %v473
  %v559 = vld [vmem:[%s1] sm:$0xf]
  %v560 = vld [vmem:[%s1 + $0x4] sm:$0xf]
  %v561 = vld [vmem:[%s1 + $0x8] sm:$0xf]
  %v562 = vld [vmem:[%s1 + $0xc] sm:$0xf]
  %v563 = vld [vmem:[%s1 + $0x10] sm:$0xf]
  %v564 = vld [vmem:[%s1 + $0x14] sm:$0xf]
  %v565 = vld [vmem:[%s1 + $0x18] sm:$0xf]
  %v566 = vld [vmem:[%s1 + $0x1c] sm:$0xf]
  %v567 = vld [vmem:[%s1 + $0x20] sm:$0xf]
  %v568 = vld [vmem:[%s1 + $0x24] sm:$0xf]
  %v569 = vld [vmem:[%s1 + $0x28] sm:$0xf]
  %v570 = vld [vmem:[%s1 + $0x2c] sm:$0xf]
  %v571 = vld [vmem:[%s1 + $0x30] sm:$0xf]
  %v572 = vld [vmem:[%s1 + $0x34] sm:$0xf]
  %v573 = vld [vmem:[%s1 + $0x38] sm:$0xf]
  %v574 = vld [vmem:[%s1 + $0x3c] sm:$0xf]
  %v575 = vld [vmem:[%s1 + $0x40] sm:$0xf]
  %v576 = vld [vmem:[%s1 + $0x44] sm:$0xf]
  %v577 = vld [vmem:[%s1 + $0x48] sm:$0xf]
  %v578 = vld [vmem:[%s1 + $0x4c] sm:$0xf]
  %v579 = vld [vmem:[%s2] sm:$0x1]
  %v581 = vlaneseq
  %v582 = vshrl.u32 %v581, 7
  %v583 = vsub.s32 0, %v582
  %v584 = vrot.slane %v579, %v583
  %v606 = vunpack.c.l.b16 %v559
  %v607 = vunpack.c.l.b16 %v560
  %v608 = vunpack.c.l.b16 %v561
  %v609 = vunpack.c.l.b16 %v562
  %v610 = vunpack.c.l.b16 %v563
  %v611 = vunpack.c.l.b16 %v564
  %v612 = vunpack.c.l.b16 %v565
  %v613 = vunpack.c.l.b16 %v566
  %v614 = vunpack.c.l.b16 %v567
  %v615 = vunpack.c.l.b16 %v568
  %v616 = vunpack.c.l.b16 %v569
  %v617 = vunpack.c.l.b16 %v570
  %v618 = vunpack.c.l.b16 %v571
  %v619 = vunpack.c.l.b16 %v572
  %v620 = vunpack.c.l.b16 %v573
  %v621 = vunpack.c.l.b16 %v574
  %v622 = vunpack.c.l.b16 %v575
  %v623 = vunpack.c.l.b16 %v576
  %v624 = vunpack.c.l.b16 %v577
  %v625 = vunpack.c.l.b16 %v578
  %v626 = vpack.c.b16 %v607, %v606
  %v627 = vpack.c.b16 %v609, %v608
  %v628 = vpack.c.b16 %v611, %v610
  %v629 = vpack.c.b16 %v613, %v612
  %v630 = vpack.c.b16 %v615, %v614
  %v631 = vpack.c.b16 %v617, %v616
  %v632 = vpack.c.b16 %v619, %v618
  %v633 = vpack.c.b16 %v621, %v620
  %v634 = vpack.c.b16 %v623, %v622
  %v635 = vpack.c.b16 %v625, %v624
  %v647 = vsel %vm492, %v544, 0
  %v650 = vsel %vm492, %v546, 0
  %v653 = vsel %vm492, %v548, 0
  %v656 = vsel %vm492, %v550, 0
  %v659 = vsel %vm492, %v552, 0
  %v662 = vsel %vm492, %v554, 0
  %v665 = vsel %vm492, %v556, 0
  %v668 = vsel %vm492, %v558, 0
  %670 = vmatprep.subr.bf16.mxu0 0
  %671 = vmatpush1.bf16.msra.mxu0 %v633
  %672 = vmatprep.subr.bf16.mxu0 0
  %673 = vmatpush1.bf16.msra.mxu0 %v632
  %674 = vmatprep.subr.bf16.mxu0 0
  %675 = vmatpush1.bf16.msra.mxu0 %v631
  %676 = vmatprep.subr.bf16.mxu0 0
  %677 = vmatpush1.bf16.msra.mxu0 %v630
  %678 = vmatprep.subr.bf16.mxu0 0
  %679 = vmatpush1.bf16.msra.mxu0 %v629
  %680 = vmatprep.subr.bf16.mxu0 0
  %681 = vmatpush1.bf16.msra.mxu0 %v628
  %682 = vmatprep.subr.bf16.mxu0 0
  %683 = vmatpush1.bf16.msra.mxu0 %v627
  %684 = vmatprep.subr.bf16.mxu0 0
  %685 = vmatpush1.bf16.msra.mxu0 %v626
  %686 = vmatprep.subr.bf16.mxu0 0
  %687 = vmatpush2.bf16.msra.mxu0 0
  %688 = vmatprep.subr.bf16.mxu0 0
  %689 = vmatpush2.bf16.msra.mxu0 0
  %690 = vmatprep.subr.bf16.mxu0 0
  %691 = vmatpush2.bf16.msra.mxu0 0
  %692 = vmatprep.subr.bf16.mxu0 0
  %693 = vmatpush2.bf16.msra.mxu0 0
  %694 = vmatprep.subr.bf16.mxu0 0
  %695 = vmatpush2.bf16.msra.mxu0 0
  %696 = vmatprep.subr.bf16.mxu0 0
  %697 = vmatpush2.bf16.msra.mxu0 0
  %698 = vmatprep.subr.bf16.mxu0 0
  %699 = vmatpush2.bf16.msra.mxu0 %v635
  %700 = vmatprep.subr.bf16.mxu0 0
  %701 = vmatpush2.bf16.msra.mxu0 %v634
  %702 = vmatprep.mubr.bf16.mxu0 %v647
  %703 = vmatmul.mubr.bf16.gmra.mxu0 %v543
  %v704 = vpop.f32.mrf.mxu0
  %v705 = vadd.f32 %v584, %v704
  %v706 = vpop.f32.mrf.mxu0
  %v707 = vpop.f32.mrf.mxu0
  %v708 = vadd.f32 %v584, %v707
  %v709 = vpop.f32.mrf.mxu0
  %710 = vmatprep.mubr.bf16.mxu0 %v650
  %711 = vmatmul.mubr.bf16.gmra.mxu0 %v545
  %v712 = vpop.f32.mrf.mxu0
  %v713 = vadd.f32 %v584, %v712
  %v714 = vpop.f32.mrf.mxu0
  %v715 = vpop.f32.mrf.mxu0
  %v716 = vadd.f32 %v584, %v715
  %v717 = vpop.f32.mrf.mxu0
  %718 = vmatprep.mubr.bf16.mxu0 %v653
  %719 = vmatmul.mubr.bf16.gmra.mxu0 %v547
  %v720 = vpop.f32.mrf.mxu0
  %v721 = vadd.f32 %v584, %v720
  %v722 = vpop.f32.mrf.mxu0
  %v723 = vpop.f32.mrf.mxu0
  %v724 = vadd.f32 %v584, %v723
  %v725 = vpop.f32.mrf.mxu0
  %726 = vmatprep.mubr.bf16.mxu0 %v656
  %727 = vmatmul.mubr.bf16.gmra.mxu0 %v549
  %v728 = vpop.f32.mrf.mxu0
  %v729 = vadd.f32 %v584, %v728
  %v730 = vpop.f32.mrf.mxu0
  %v731 = vpop.f32.mrf.mxu0
  %v732 = vadd.f32 %v584, %v731
  %v733 = vpop.f32.mrf.mxu0
  %734 = vmatprep.mubr.bf16.mxu0 %v659
  %735 = vmatmul.mubr.bf16.gmra.mxu0 %v551
  %v736 = vpop.f32.mrf.mxu0
  %v737 = vadd.f32 %v584, %v736
  %v738 = vpop.f32.mrf.mxu0
  %v739 = vpop.f32.mrf.mxu0
  %v740 = vadd.f32 %v584, %v739
  %v741 = vpop.f32.mrf.mxu0
  %742 = vmatprep.mubr.bf16.mxu0 %v662
  %743 = vmatmul.mubr.bf16.gmra.mxu0 %v553
  %v744 = vpop.f32.mrf.mxu0
  %v745 = vadd.f32 %v584, %v744
  %v746 = vpop.f32.mrf.mxu0
  %v747 = vpop.f32.mrf.mxu0
  %v748 = vadd.f32 %v584, %v747
  %v749 = vpop.f32.mrf.mxu0
  %750 = vmatprep.mubr.bf16.mxu0 %v665
  %751 = vmatmul.mubr.bf16.gmra.mxu0 %v555
  %v752 = vpop.f32.mrf.mxu0
  %v753 = vadd.f32 %v584, %v752
  %v754 = vpop.f32.mrf.mxu0
  %v755 = vpop.f32.mrf.mxu0
  %v756 = vadd.f32 %v584, %v755
  %v757 = vpop.f32.mrf.mxu0
  %758 = vmatprep.mubr.bf16.mxu0 %v668
  %759 = vmatmul.mubr.bf16.gmra.mxu0 %v557
  %v760 = vpop.f32.mrf.mxu0
  %v761 = vadd.f32 %v584, %v760
  %v762 = vpop.f32.mrf.mxu0
  %v763 = vpop.f32.mrf.mxu0
  %v764 = vadd.f32 %v584, %v763
  %v765 = vpop.f32.mrf.mxu0
  %766 = vdwg.mxu0
  %v767 = vmax.f32 %v705, 0.0
  %v768 = vmax.f32 %v708, 0.0
  %v769 = vmax.f32 %v713, 0.0
  %v770 = vmax.f32 %v716, 0.0
  %v771 = vmax.f32 %v721, 0.0
  %v772 = vmax.f32 %v724, 0.0
  %v773 = vmax.f32 %v729, 0.0
  %v774 = vmax.f32 %v732, 0.0
  %v775 = vmax.f32 %v737, 0.0
  %v776 = vmax.f32 %v740, 0.0
  %v777 = vmax.f32 %v745, 0.0
  %v778 = vmax.f32 %v748, 0.0
  %v779 = vmax.f32 %v753, 0.0
  %v780 = vmax.f32 %v756, 0.0
  %v781 = vmax.f32 %v761, 0.0
  %v782 = vmax.f32 %v764, 0.0
  %v783 = vld [vmem:[%s3] sm:$0xff]
  %v784 = vld [vmem:[%s3 + $0x8] sm:$0xff]
  %v785 = vmul.f32 %v767, %v783
  %v786 = vmul.f32 %v768, %v784
  %v787 = vmul.f32 %v769, %v783
  %v788 = vmul.f32 %v770, %v784
  %v789 = vmul.f32 %v771, %v783
  %v790 = vmul.f32 %v772, %v784
  %v791 = vmul.f32 %v773, %v783
  %v792 = vmul.f32 %v774, %v784
  %v793 = vmul.f32 %v775, %v783
  %v794 = vmul.f32 %v776, %v784
  %v795 = vmul.f32 %v777, %v783
  %v796 = vmul.f32 %v778, %v784
  %v797 = vmul.f32 %v779, %v783
  %v798 = vmul.f32 %v780, %v784
  %v799 = vmul.f32 %v781, %v783
  %v800 = vmul.f32 %v782, %v784
  %v801 = vmax.f32 %v785, %v786
  %v802 = vrot.slane %v801, 4
  %v803 = vmax.f32 %v801, %v802
  %v804 = vrot.slane %v803, 2
  %v805 = vmax.f32 %v803, %v804
  %v806 = vrot.slane %v805, 1
  %v807 = vmax.f32 %v805, %v806
  %v808 = vmax.f32 %v787, %v788
  %v809 = vrot.slane %v808, 4
  %v810 = vmax.f32 %v808, %v809
  %v811 = vrot.slane %v810, 2
  %v812 = vmax.f32 %v810, %v811
  %v813 = vrot.slane %v812, 1
  %v814 = vmax.f32 %v812, %v813
  %v815 = vmax.f32 %v789, %v790
  %v816 = vrot.slane %v815, 4
  %v817 = vmax.f32 %v815, %v816
  %v818 = vrot.slane %v817, 2
  %v819 = vmax.f32 %v817, %v818
  %v820 = vrot.slane %v819, 1
  %v821 = vmax.f32 %v819, %v820
  %v822 = vmax.f32 %v791, %v792
  %v823 = vrot.slane %v822, 4
  %v824 = vmax.f32 %v822, %v823
  %v825 = vrot.slane %v824, 2
  %v826 = vmax.f32 %v824, %v825
  %v827 = vrot.slane %v826, 1
  %v828 = vmax.f32 %v826, %v827
  %v829 = vmax.f32 %v793, %v794
  %v830 = vrot.slane %v829, 4
  %v831 = vmax.f32 %v829, %v830
  %v832 = vrot.slane %v831, 2
  %v833 = vmax.f32 %v831, %v832
  %v834 = vrot.slane %v833, 1
  %v835 = vmax.f32 %v833, %v834
  %v836 = vmax.f32 %v795, %v796
  %v837 = vrot.slane %v836, 4
  %v838 = vmax.f32 %v836, %v837
  %v839 = vrot.slane %v838, 2
  %v840 = vmax.f32 %v838, %v839
  %v841 = vrot.slane %v840, 1
  %v842 = vmax.f32 %v840, %v841
  %v843 = vmax.f32 %v797, %v798
  %v844 = vrot.slane %v843, 4
  %v845 = vmax.f32 %v843, %v844
  %v846 = vrot.slane %v845, 2
  %v847 = vmax.f32 %v845, %v846
  %v848 = vrot.slane %v847, 1
  %v849 = vmax.f32 %v847, %v848
  %v850 = vmax.f32 %v799, %v800
  %v851 = vrot.slane %v850, 4
  %v852 = vmax.f32 %v850, %v851
  %v853 = vrot.slane %v852, 2
  %v854 = vmax.f32 %v852, %v853
  %v855 = vrot.slane %v854, 1
  %v856 = vmax.f32 %v854, %v855
  %v857 = vld [vmem:[%s4] sm:$0xff]
  %v858 = vld [vmem:[%s4 + $0x8] sm:$0xff]
  %v859 = vld [vmem:[%s4 + $0x10] sm:$0xff]
  %v860 = vld [vmem:[%s4 + $0x18] sm:$0xff]
  %v861 = vld [vmem:[%s4 + $0x20] sm:$0xff]
  %v862 = vld [vmem:[%s4 + $0x28] sm:$0xff]
  %v863 = vld [vmem:[%s4 + $0x30] sm:$0xff]
  %v864 = vld [vmem:[%s4 + $0x38] sm:$0xff]
  %v865 = vld [vmem:[%s4 + $0x40] sm:$0xff]
  %v866 = vld [vmem:[%s4 + $0x48] sm:$0xff]
  %v867 = vld [vmem:[%s4 + $0x50] sm:$0xff]
  %v868 = vld [vmem:[%s4 + $0x58] sm:$0xff]
  %v869 = vld [vmem:[%s4 + $0x60] sm:$0xff]
  %v870 = vld [vmem:[%s4 + $0x68] sm:$0xff]
  %v871 = vld [vmem:[%s4 + $0x70] sm:$0xff]
  %v872 = vld [vmem:[%s4 + $0x78] sm:$0xff]
  %v873 = vld [vmem:[%s5] sm:$0x1]
  %v875 = vlaneseq
  %v876 = vshrl.u32 %v875, 7
  %v877 = vsub.s32 0, %v876
  %v878 = vrot.slane %v873, %v877
  %vm888 = vcmask 1041409
  %v889 = vsel %vm888, %v814, %v807
  %vm890 = vcmask 1042434
  %v891 = vsel %vm890, %v821, %v889
  %vm892 = vcmask 1043459
  %v893 = vsel %vm892, %v828, %v891
  %vm894 = vcmask 1044484
  %v895 = vsel %vm894, %v835, %v893
  %vm896 = vcmask 1045509
  %v897 = vsel %vm896, %v842, %v895
  %vm898 = vcmask 1046534
  %v899 = vsel %vm898, %v849, %v897
  %vm900 = vcmask 1047559
  %v901 = vsel %vm900, %v856, %v899
  %903 = vmatprep.subr.mxu0 0.0
  %904 = vmatpush1.msra.mxu0 %v872
  %905 = vmatprep.subr.mxu0 0.0
  %906 = vmatpush1.msra.mxu0 %v871
  %907 = vmatprep.subr.mxu0 0.0
  %908 = vmatpush1.msra.mxu0 %v870
  %909 = vmatprep.subr.mxu0 0.0
  %910 = vmatpush1.msra.mxu0 %v869
  %911 = vmatprep.subr.mxu0 0.0
  %912 = vmatpush1.msra.mxu0 %v868
  %913 = vmatprep.subr.mxu0 0.0
  %914 = vmatpush1.msra.mxu0 %v867
  %915 = vmatprep.subr.mxu0 0.0
  %916 = vmatpush1.msra.mxu0 %v866
  %917 = vmatprep.subr.mxu0 0.0
  %918 = vmatpush1.msra.mxu0 %v865
  %919 = vmatprep.subr.mxu0 0.0
  %920 = vmatpush1.msra.mxu0 %v864
  %921 = vmatprep.subr.mxu0 0.0
  %922 = vmatpush1.msra.mxu0 %v863
  %923 = vmatprep.subr.mxu0 0.0
  %924 = vmatpush1.msra.mxu0 %v862
  %925 = vmatprep.subr.mxu0 0.0
  %926 = vmatpush1.msra.mxu0 %v861
  %927 = vmatprep.subr.mxu0 0.0
  %928 = vmatpush1.msra.mxu0 %v860
  %929 = vmatprep.subr.mxu0 0.0
  %930 = vmatpush1.msra.mxu0 %v859
  %931 = vmatprep.subr.mxu0 0.0
  %932 = vmatpush1.msra.mxu0 %v858
  %933 = vmatprep.subr.mxu0 0.0
  %934 = vmatpush1.msra.mxu0 %v857
  %935 = vmatprep.subr.mxu0 0.0
  %936 = vmatpush2.msra.mxu0 0.0
  %937 = vmatprep.subr.mxu0 0.0
  %938 = vmatpush2.msra.mxu0 0.0
  %939 = vmatprep.subr.mxu0 0.0
  %940 = vmatpush2.msra.mxu0 0.0
  %941 = vmatprep.subr.mxu0 0.0
  %942 = vmatpush2.msra.mxu0 0.0
  %943 = vmatprep.subr.mxu0 0.0
  %944 = vmatpush2.msra.mxu0 0.0
  %945 = vmatprep.subr.mxu0 0.0
  %946 = vmatpush2.msra.mxu0 0.0
  %947 = vmatprep.subr.mxu0 0.0
  %948 = vmatpush2.msra.mxu0 0.0
  %949 = vmatprep.subr.mxu0 0.0
  %950 = vmatpush2.msra.mxu0 0.0
  %951 = vmatprep.subr.mxu0 0.0
  %952 = vmatpush2.msra.mxu0 0.0
  %953 = vmatprep.subr.mxu0 0.0
  %954 = vmatpush2.msra.mxu0 0.0
  %955 = vmatprep.subr.mxu0 0.0
  %956 = vmatpush2.msra.mxu0 0.0
  %957 = vmatprep.subr.mxu0 0.0
  %958 = vmatpush2.msra.mxu0 0.0
  %959 = vmatprep.subr.mxu0 0.0
  %960 = vmatpush2.msra.mxu0 0.0
  %961 = vmatprep.subr.mxu0 0.0
  %962 = vmatpush2.msra.mxu0 0.0
  %963 = vmatprep.subr.mxu0 0.0
  %964 = vmatpush2.msra.mxu0 0.0
  %965 = vmatprep.subr.mxu0 0.0
  %966 = vmatpush2.msra.mxu0 0.0
  %967 = vmatprep.mubr.f32.mxu0 0.0
  %968 = vmatmul.mubr.f32.gmra.mxu0 %v901
  %v969 = vpop.f32.mrf.mxu0
  %v970 = vadd.f32 %v878, %v969
  %v971 = vpop.f32.mrf.mxu0
  %972 = vdwg.mxu0
  %973 = vst [vmem:[%s6] sm:$0xff] %v970
  // Predicated region
  $region26: #{cnn_classifier_forward.1} parent=0 // pred_check
    _
  $region27: #{cnn_classifier_forward.1} parent=0 // pred_check_branch
    %975 = sbr.rel (0) target = $region29
  $region28: #{cnn_classifier_forward.1} parent=0 // pred_region
    _
  $region29: #{cnn_classifier_forward.1} parent=0 // pred_fallthru
    _
  // Predicated region
  $region30: #{cnn_classifier_forward.1} parent=0 // pred_check
    _
  $region31: #{cnn_classifier_forward.1} parent=0 // pred_check_branch
    %977 = sbr.rel (0) target = $region33
  $region32: #{cnn_classifier_forward.1} parent=0 // pred_region
    _
  $region33: #{cnn_classifier_forward.1} parent=0 // pred_fallthru
    _

</llo_original>
